<compile_context>
chip_gen: v6e
topology: v6e:2x2x1
jax: 0.10.0
libtpu: 0.0.40
codegen_flags: <defaults>
</compile_context>

<pallas_src>
import functools
import math

import jax
import jax.numpy as jnp
import numpy as np
from jax import lax
from jax.experimental import pallas as pl
from jax.experimental.pallas import tpu as pltpu

_EPS = 1e-12                 # matches torch.nn.functional.normalize eps
_NEG_INF = -1e30             # large finite negative: keeps the online-softmax
                             # rescale NaN-free on fully-masked tiles/lanes


def _round_up(x, m):
    return ((x + m - 1) // m) * m


def _pow2_floor(x, lo):
    p = lo
    while p * 2 <= x:
        p *= 2
    return p


@functools.lru_cache(maxsize=None)
def _vmem_limit_bytes():
    cap = 0
    try:
        fn = getattr(pltpu, "get_tpu_info", None)
        if fn is not None:
            cap = int(getattr(fn(), "vmem_capacity_bytes", 0) or 0)
    except Exception:
        cap = 0
    if cap <= 0:
        cap = 64 * 1024 * 1024          # conservative fallback (v7x physical)
    return max(32 * 1024 * 1024, min((cap * 3) // 4, 100 * 1024 * 1024))


def _compiler_params(*sems):
    return pltpu.CompilerParams(dimension_semantics=tuple(sems),
                                vmem_limit_bytes=_vmem_limit_bytes())


# ---------------------------------------------------------------------------
# Prep kernels: L2-normalize (rsqrt/EUP), fold temperature, emit label logits
# ---------------------------------------------------------------------------
def _prep_inbatch_kernel(a_ref, p_ref, a_out_ref, p_out_ref, pos_ref, *,
                         scale, inv_t):
    a = a_ref[...].astype(jnp.float32)
    p = p_ref[...].astype(jnp.float32)
    # x / max(||x||, eps) == x * rsqrt(max(||x||^2, eps^2))
    a_n = a * lax.rsqrt(jnp.maximum(jnp.sum(a * a, axis=1, keepdims=True),
                                    _EPS * _EPS))
    p_n = p * lax.rsqrt(jnp.maximum(jnp.sum(p * p, axis=1, keepdims=True),
                                    _EPS * _EPS))
    # Per-row positive (label) logit in f32.
    pos_ref[...] = jnp.sum(a_n * p_n, axis=1, keepdims=True) * inv_t
    # Scaled bf16 MXU operands (accumulation in the dot stays f32).
    a_out_ref[...] = (a_n * scale).astype(jnp.bfloat16)
    p_out_ref[...] = (p_n * scale).astype(jnp.bfloat16)


def _prep_inbatch(anchor, positive, *, tb, dp, scale, inv_t):
    b, d = anchor.shape
    bp = _round_up(b, tb)
    a = jnp.pad(anchor.astype(jnp.float32), ((0, bp - b), (0, dp - d)))
    p = jnp.pad(positive.astype(jnp.float32), ((0, bp - b), (0, dp - d)))
    kern = functools.partial(_prep_inbatch_kernel, scale=scale, inv_t=inv_t)
    return pl.pallas_call(
        kern,
        grid_spec=pltpu.PrefetchScalarGridSpec(
            num_scalar_prefetch=0,
            grid=(bp // tb,),
            in_specs=[pl.BlockSpec((tb, dp), lambda i: (i, 0)),
                      pl.BlockSpec((tb, dp), lambda i: (i, 0))],
            out_specs=(pl.BlockSpec((tb, dp), lambda i: (i, 0)),
                       pl.BlockSpec((tb, dp), lambda i: (i, 0)),
                       pl.BlockSpec((tb, 1), lambda i: (i, 0)))),
        out_shape=(jax.ShapeDtypeStruct((bp, dp), jnp.bfloat16),
                   jax.ShapeDtypeStruct((bp, dp), jnp.bfloat16),
                   jax.ShapeDtypeStruct((bp, 1), jnp.float32)),
        compiler_params=_compiler_params("parallel"),
    )(a, p)


def _prep_negs_kernel(a_ref, p_ref, a_out_ref, pos_ref, *, inv_t):
    a = a_ref[...].astype(jnp.float32)
    p = p_ref[...].astype(jnp.float32)
    a_n = a * lax.rsqrt(jnp.maximum(jnp.sum(a * a, axis=1, keepdims=True),
                                    _EPS * _EPS))
    p_n = p * lax.rsqrt(jnp.maximum(jnp.sum(p * p, axis=1, keepdims=True),
                                    _EPS * _EPS))
    pos_ref[...] = jnp.sum(a_n * p_n, axis=1, keepdims=True) * inv_t
    # f32 anchor with 1/temperature folded in (no bf16, no D padding, and the
    # discarded normalized-positive write of the old version is gone).
    a_out_ref[...] = a_n * inv_t


def _prep_negs(anchor, positive, *, tb, bp, inv_t):
    b, d = anchor.shape
    a = anchor.astype(jnp.float32)
    p = positive.astype(jnp.float32)
    if bp != b:
        a = jnp.pad(a, ((0, bp - b), (0, 0)))
        p = jnp.pad(p, ((0, bp - b), (0, 0)))
    kern = functools.partial(_prep_negs_kernel, inv_t=inv_t)
    return pl.pallas_call(
        kern,
        grid_spec=pltpu.PrefetchScalarGridSpec(
            num_scalar_prefetch=0,
            grid=(bp // tb,),
            in_specs=[pl.BlockSpec((tb, d), lambda i: (i, 0)),
                      pl.BlockSpec((tb, d), lambda i: (i, 0))],
            out_specs=(pl.BlockSpec((tb, d), lambda i: (i, 0)),
                       pl.BlockSpec((tb, 1), lambda i: (i, 0)))),
        out_shape=(jax.ShapeDtypeStruct((bp, d), jnp.float32),
                   jax.ShapeDtypeStruct((bp, 1), jnp.float32)),
        compiler_params=_compiler_params("parallel"),
    )(a, p)


# ---------------------------------------------------------------------------
# In-batch branch: tiled similarity + lane-blocked online log-sum-exp
# ---------------------------------------------------------------------------
def _inbatch_lse_kernel(rrow_ref, rcol_ref, out_ref, m_sc, l_sc, *,
                        n_valid, need_col_mask):
    i = pl.program_id(0)
    j = pl.program_id(1)
    tr = rrow_ref.shape[0]
    tc = rcol_ref.shape[0]
    nl = tc // 128

    @pl.when(j == 0)
    def _():
        m_sc[...] = jnp.full(m_sc.shape, _NEG_INF, jnp.float32)
        l_sc[...] = jnp.zeros(l_sc.shape, jnp.float32)

    # bf16 MXU matmul with f32 accumulation; operands already carry
    # 1/sqrt(temperature), so s is sim / temperature directly.
    s = lax.dot_general(rrow_ref[...], rcol_ref[...],
                        (((1,), (1,)), ((), ())),
                        preferred_element_type=jnp.float32)          # (tr, tc)

    gr = i * tr + lax.broadcasted_iota(jnp.int32, (tr, 1), 0)
    gc = j * tc + lax.broadcasted_iota(jnp.int32, (1, tc), 1)
    mask = gr == gc                                   # diagonal (self-sim)
    if need_col_mask:                                 # static: only if padded
        mask = mask | (gc >= n_valid)
    s = jnp.where(mask, _NEG_INF, s)

    # Lane-blocked online softmax: accumulators are (tr, 128); per-tile
    # reductions are pure VPU vreg-wise max/add over the tc//128 lane blocks.
    t_max = s[:, 0:128]
    for v in range(1, nl):
        t_max = jnp.maximum(t_max, s[:, v * 128:(v + 1) * 128])
    m_prev = m_sc[...]
    m_new = jnp.maximum(m_prev, t_max)
    p_sum = jnp.exp(s[:, 0:128] - m_new)
    for v in range(1, nl):
        p_sum = p_sum + jnp.exp(s[:, v * 128:(v + 1) * 128] - m_new)
    l_sc[...] = jnp.exp(m_prev - m_new) * l_sc[...] + p_sum
    m_sc[...] = m_new

    @pl.when(j == pl.num_programs(1) - 1)
    def _():
        # Single cross-lane (XLU) combine per row tile.
        m_lane = m_sc[...]
        l_lane = l_sc[...]
        m_row = jnp.max(m_lane, axis=1, keepdims=True)
        l_row = jnp.sum(jnp.exp(m_lane - m_row) * l_lane, axis=1, keepdims=True)
        out_ref[...] = m_row + jnp.log(l_row)


def _info_nce_inbatch(anchor, positive, temperature, *, row_block=None,
                      col_block=None, b_block=None):
    b, d = anchor.shape
    dp = _round_up(d, 128)
    two_b = 2 * b
    inv_t = 1.0 / float(temperature)
    inv_sqrt_t = 1.0 / math.sqrt(float(temperature))
    vmem_limit = _vmem_limit_bytes()

    # Prep tile: mem-bound, target >= ~4 MiB per f32 input block.
    if b_block:
        tb = _round_up(b_block, 16)
    else:
        tb = max(16, min(512, ((4 * 1024 * 1024) // (dp * 4)) // 16 * 16))
    tb = min(tb, _round_up(b, 16))

    a_q, p_q, pos = _prep_inbatch(anchor, positive, tb=tb, dp=dp,
                                  scale=inv_sqrt_t, inv_t=inv_t)
    pos_sum = jnp.sum(pos[:b, 0])          # sum_i a_n[i] . p_n[i] / T

    # LSE tiles: tr multiple of 16, tc multiple of 128 (lane-blocked accum).
    if row_block:
        tr = _round_up(row_block, 16)
    else:
        tr = _pow2_floor(min(256, _round_up(two_b, 16)), 16)
    if col_block:
        tc = _round_up(col_block, 128)
    else:
        tc = _pow2_floor(min(512, _round_up(two_b, 128)), 128)
    tr = min(tr, _round_up(two_b, 16))
    tc = min(tc, _round_up(two_b, 128))

    # Keep the double-buffered blocks + tile temporaries under the VMEM limit.
    def _footprint(tr_, tc_):
        return (2 * (tr_ + tc_) * dp * 2 + 4 * tr_ * tc_ * 4
                + 2 * tr_ * 128 * 4)
    while _footprint(tr, tc) > (vmem_limit * 3) // 5 and tc > 128:
        tc //= 2
    while _footprint(tr, tc) > (vmem_limit * 3) // 5 and tr > 16:
        tr //= 2

    s_rows = _round_up(two_b, math.lcm(tr, tc))
    if row_block is None:
        # v7x megacore: keep >= 2 tiles on the "parallel" row axis.
        while s_rows // tr < 2 and tr >= 32:
            tr //= 2

    reps = jnp.concatenate([a_q[:b], p_q[:b]], axis=0)
    if s_rows != two_b:
        reps = jnp.pad(reps, ((0, s_rows - two_b), (0, 0)))

    kern = functools.partial(_inbatch_lse_kernel, n_valid=two_b,
                             need_col_mask=(s_rows != two_b))
    row_lse = pl.pallas_call(
        kern,
        grid_spec=pltpu.PrefetchScalarGridSpec(
            num_scalar_prefetch=0,
            grid=(s_rows // tr, s_rows // tc),
            in_specs=[pl.BlockSpec((tr, dp), lambda i, j: (i, 0)),
                      pl.BlockSpec((tc, dp), lambda i, j: (j, 0))],
            out_specs=pl.BlockSpec((tr, 1), lambda i, j: (i, 0)),
            scratch_shapes=[pltpu.VMEM((tr, 128), jnp.float32),
                            pltpu.VMEM((tr, 128), jnp.float32)]),
        out_shape=jax.ShapeDtypeStruct((s_rows, 1), jnp.float32),
        compiler_params=_compiler_params("parallel", "arbitrary"),
    )(reps, reps)

    # CE = mean_r (lse_r - label_logit_r); label logits sum to 2 * pos_sum.
    return jnp.sum(row_lse[:two_b, 0]) / two_b - pos_sum / b


# ---------------------------------------------------------------------------
# Explicit-negatives branch: fused VPU contraction + online LSE over K tiles
# ---------------------------------------------------------------------------
def _negs_lse_kernel(a_ref, pos_ref, negs_ref, out_ref, m_sc, l_sc, *,
                     num_k, need_mask):
    j = pl.program_id(1)
    tk = negs_ref.shape[1]

    @pl.when(j == 0)
    def _():
        m_sc[...] = pos_ref[...]                       # fold positive logit in
        l_sc[...] = jnp.ones(l_sc.shape, jnp.float32)  # exp(pos - pos)

    negs = negs_ref[...].astype(jnp.float32)           # (tb, tk, d)
    a = a_ref[...]                                      # (tb, 1, d) f32, a_n/T
    # Fused VPU pass: raw dot + squared norm in one sweep, normalize after.
    rawdot = jnp.sum(a * negs, axis=-1)                 # (tb, tk)
    normsq = jnp.sum(negs * negs, axis=-1)              # (tb, tk)
    s = rawdot * lax.rsqrt(jnp.maximum(normsq, _EPS * _EPS))

    if need_mask:                                       # static: only if padded
        gk = j * tk + lax.broadcasted_iota(jnp.int32, (1, tk), 1)
        s = jnp.where(gk >= num_k, _NEG_INF, s)

    m_prev = m_sc[...]
    m_new = jnp.maximum(m_prev, jnp.max(s, axis=-1, keepdims=True))
    l_sc[...] = (jnp.exp(m_prev - m_new) * l_sc[...]
                 + jnp.sum(jnp.exp(s - m_new), axis=-1, keepdims=True))
    m_sc[...] = m_new

    @pl.when(j == pl.num_programs(1) - 1)
    def _():
        out_ref[...] = m_sc[...] + jnp.log(l_sc[...]) - pos_ref[...]


def _pick_neg_b_tile(b, b_block):
    if b_block:
        return min(_round_up(b_block, 8), _round_up(b, 8))
    if b <= 512:
        if b % 16 == 0 and b >= 32:
            return b // 2                 # two parallel row tiles (v7x), no pad
        return b                          # single full block == array dim
    if b % 256 == 0:
        return 256
    for cand in range(256, 127, -8):      # divisor >= 128 avoids the pad copy
        if b % cand == 0:
            return cand
    return 256


def _pick_neg_k_tile(k_num, k_block, tb, d, itemsize, vmem_limit):
    if k_block:
        tk = min(_round_up(k_block, 8), _round_up(k_num, 8))
    else:
        budget = max(2 * 1024 * 1024, vmem_limit // 8)
        per_k = tb * d * (2 * itemsize + 8)   # dbl-buffered input + 2 f32 temps
        tk = max(8, (budget // per_k) // 8 * 8)
    if tk >= k_num:
        return k_num                          # single tile == full dim: no pad
    if k_num % tk:
        lo = max(8, ((tk // 2 + 7) // 8) * 8)
        for cand in range(tk, lo - 1, -8):    # snap to a divisor when possible
            if k_num % cand == 0:
                return cand
    return tk


def _info_nce_negs(anchor, positive, negatives, temperature, *, b_block=None,
                   k_block=None):
    b, d = anchor.shape
    k_num = negatives.shape[1]
    inv_t = 1.0 / float(temperature)
    vmem_limit = _vmem_limit_bytes()
    itemsize = jnp.dtype(negatives.dtype).itemsize

    tb = _pick_neg_b_tile(b, b_block)
    # Keep the minimum-tk footprint (negatives block + temps) within ~half VMEM.
    tb_cap = max(8, (((vmem_limit // 2) // (8 * d * (2 * itemsize + 8))) // 8) * 8)
    tb = min(tb, tb_cap)
    bp = _round_up(b, tb)

    tk = _pick_neg_k_tile(k_num, k_block, tb, d, itemsize, vmem_limit)
    kp = _round_up(k_num, tk)

    a_s, pos = _prep_negs(anchor, positive, tb=tb, bp=bp, inv_t=inv_t)

    # Negatives stay in their original dtype; D is never padded, and B/K are
    # only padded (one HBM copy) when the tiles do not divide them.
    if bp != b or kp != k_num:
        negs = jnp.pad(negatives, ((0, bp - b), (0, kp - k_num), (0, 0)))
    else:
        negs = negatives

    kern = functools.partial(_negs_lse_kernel, num_k=k_num,
                             need_mask=(kp != k_num))
    row_loss = pl.pallas_call(
        kern,
        grid_spec=pltpu.PrefetchScalarGridSpec(
            num_scalar_prefetch=0,
            grid=(bp // tb, kp // tk),
            in_specs=[pl.BlockSpec((tb, 1, d), lambda i, j: (i, 0, 0)),
                      pl.BlockSpec((tb, 1), lambda i, j: (i, 0)),
                      pl.BlockSpec((tb, tk, d), lambda i, j: (i, j, 0))],
            out_specs=pl.BlockSpec((tb, 1), lambda i, j: (i, 0)),
            scratch_shapes=[pltpu.VMEM((tb, 1), jnp.float32),
                            pltpu.VMEM((tb, 1), jnp.float32)]),
        out_shape=jax.ShapeDtypeStruct((bp, 1), jnp.float32),
        compiler_params=_compiler_params("parallel", "arbitrary"),
    )(a_s.reshape(bp, 1, d), pos, negs)

    return jnp.sum(row_loss[:b, 0]) / b


# ---------------------------------------------------------------------------
# Public wrapper
# ---------------------------------------------------------------------------
def info_nce_loss(anchor, positive, negatives=None, temperature=0.1, *,
                  row_block=None, col_block=None, b_block=None, k_block=None):
    """InfoNCE loss; forward semantics match the PyTorch InfoNCELoss module."""
    if negatives is None:
        return _info_nce_inbatch(anchor, positive, temperature,
                                 row_block=row_block, col_block=col_block,
                                 b_block=b_block)
    return _info_nce_negs(anchor, positive, negatives, temperature,
                          b_block=b_block, k_block=k_block)


# ---------------------------------------------------------------------------
# Pure-JAX references (validation only)
# ---------------------------------------------------------------------------
def _l2n(x, axis):
    return x * lax.rsqrt(jnp.maximum(jnp.sum(x * x, axis=axis, keepdims=True),
                                     _EPS * _EPS))


def _lse(x, axis):
    m = jnp.max(x, axis=axis, keepdims=True)
    return jnp.squeeze(
        m + jnp.log(jnp.sum(jnp.exp(x - m), axis=axis, keepdims=True)), axis)


def _ref_inbatch_exact(anchor, positive, temperature):
    b = anchor.shape[0]
    a_n = _l2n(anchor.astype(jnp.float32), 1)
    p_n = _l2n(positive.astype(jnp.float32), 1)
    reps = jnp.concatenate([a_n, p_n], axis=0)
    sim = jnp.dot(reps, reps.T, precision=lax.Precision.HIGHEST) / temperature
    n = 2 * b
    sim = jnp.where(jnp.eye(n, dtype=bool), -jnp.inf, sim)
    labels = jnp.concatenate([jnp.arange(b) + b, jnp.arange(b)])
    logp = jax.nn.log_softmax(sim, axis=1)
    return -jnp.mean(logp[jnp.arange(n), labels])


def _ref_inbatch_mimic(anchor, positive, temperature):
    # Same math as the kernels (bf16 MXU operands, f32 label logits).
    b = anchor.shape[0]
    a_n = _l2n(anchor.astype(jnp.float32), 1)
    p_n = _l2n(positive.astype(jnp.float32), 1)
    scale = 1.0 / math.sqrt(temperature)
    a_q = (a_n * scale).astype(jnp.bfloat16).astype(jnp.float32)
    p_q = (p_n * scale).astype(jnp.bfloat16).astype(jnp.float32)
    reps = jnp.concatenate([a_q, p_q], axis=0)
    sim = jnp.dot(reps, reps.T, precision=lax.Precision.HIGHEST)
    sim = jnp.where(jnp.eye(2 * b, dtype=bool), _NEG_INF, sim)
    pos = jnp.sum(a_n * p_n, axis=1) / temperature
    return jnp.mean(_lse(sim, 1)) - jnp.sum(pos) / b


def _ref_negs_exact(anchor, positive, negatives, temperature):
    a_n = _l2n(anchor.astype(jnp.float32), 1)
    p_n = _l2n(positive.astype(jnp.float32), 1)
    n_n = _l2n(negatives.astype(jnp.float32), -1)
    pos = jnp.sum(a_n * p_n, axis=1) / temperature
    neg = jnp.einsum('bd,bkd->bk', a_n, n_n,
                     precision=lax.Precision.HIGHEST) / temperature
    logits = jnp.concatenate([pos[:, None], neg], axis=1)
    return -jnp.mean(jax.nn.log_softmax(logits, axis=1)[:, 0])


def _check(name, got, want, atol, rtol):
    got = float(np.asarray(got))
    want = float(np.asarray(want))
    if not np.allclose(got, want, atol=atol, rtol=rtol):
        raise AssertionError(f"{name}: kernel={got!r} reference={want!r}")


if __name__ == "__main__":
    temperature = 0.1
    key = jax.random.PRNGKey(0)

    configs = [
        # (B, D, K, block overrides)
        (8, 32, 4, {}),                                       # single-tile path
        (24, 72, 20, dict(row_block=32, col_block=32,         # multi-tile, online
                          b_block=16, k_block=16)),           # softmax + padding
    ]

    for idx, (bsz, dim, n_neg, blocks) in enumerate(configs):
        ka, kp, kn = jax.random.split(jax.random.fold_in(key, idx), 3)
        anchor = jax.random.normal(ka, (bsz, dim), dtype=jnp.float32)
        positive = jax.random.normal(kp, (bsz, dim), dtype=jnp.float32)
        negatives = jax.random.normal(kn, (bsz, n_neg, dim), dtype=jnp.float32)

        # Branch 1: in-batch negative sampling (negatives=None)
        loss_ib = jax.block_until_ready(
            info_nce_loss(anchor, positive, None, temperature, **blocks))
        _check(f"cfg{idx}/inbatch vs bf16 mimic", loss_ib,
               _ref_inbatch_mimic(anchor, positive, temperature), 2e-3, 2e-3)
        _check(f"cfg{idx}/inbatch vs f32 ref", loss_ib,
               _ref_inbatch_exact(anchor, positive, temperature), 8e-2, 8e-2)

        # Branch 2: explicit negatives (full f32 path in the kernel)
        loss_ng = jax.block_until_ready(
            info_nce_loss(anchor, positive, negatives, temperature, **blocks))
        _check(f"cfg{idx}/negatives vs f32 ref", loss_ng,
               _ref_negs_exact(anchor, positive, negatives, temperature),
               2e-3, 2e-3)

    print("KERNEL_OK")
</pallas_src>

<mosaic_0001>
module attributes {stable_mosaic.version = 11 : i64} {
  func.func @_prep_inbatch_kernel(%arg0: i32, %arg1: memref<16x128xf32, #tpu.memory_space<vmem>>, %arg2: memref<16x128xf32, #tpu.memory_space<vmem>>, %arg3: memref<16x128xbf16, #tpu.memory_space<vmem>>, %arg4: memref<16x128xbf16, #tpu.memory_space<vmem>>, %arg5: memref<16x1xf32, #tpu.memory_space<vmem>>) attributes {dimension_semantics = [#tpu.dimension_semantics<parallel>], iteration_bounds = array<i64: 1>, scalar_prefetch = 0 : i64, scratch_operands = 0 : i64, tpu.core_type = #tpu.core_type<tc>, window_params = [{transform_indices = @transform_0, window_bounds = array<i64: 16, 128>}, {transform_indices = @transform_1, window_bounds = array<i64: 16, 128>}, {transform_indices = @transform_2, window_bounds = array<i64: 16, 128>}, {transform_indices = @transform_3, window_bounds = array<i64: 16, 128>}, {transform_indices = @transform_4, window_bounds = array<i64: 16, 1>}]} {
    %c0 = arith.constant 0 : index
    %c0_0 = arith.constant 0 : index
    %0 = vector.load %arg1[%c0, %c0_0] : memref<16x128xf32, #tpu.memory_space<vmem>>, vector<16x128xf32>
    %c0_1 = arith.constant 0 : index
    %c0_2 = arith.constant 0 : index
    %1 = vector.load %arg2[%c0_1, %c0_2] : memref<16x128xf32, #tpu.memory_space<vmem>>, vector<16x128xf32>
    %2 = arith.mulf %0, %0 : vector<16x128xf32>
    %cst = arith.constant dense<0.000000e+00> : vector<16xf32>
    %3 = vector.multi_reduction <add>, %2, %cst [1] : vector<16x128xf32> to vector<16xf32>
    %4 = vector.shape_cast %3 : vector<16xf32> to vector<16x1xf32>
    %cst_3 = arith.constant 1.000000e-24 : f32
    %5 = vector.broadcast %cst_3 : f32 to vector<16x1xf32>
    %6 = arith.maximumf %4, %5 : vector<16x1xf32>
    %7 = math.rsqrt %6 : vector<16x1xf32>
    %8 = vector.broadcast %7 : vector<16x1xf32> to vector<16x128xf32>
    %9 = arith.mulf %0, %8 : vector<16x128xf32>
    %10 = arith.mulf %1, %1 : vector<16x128xf32>
    %cst_4 = arith.constant dense<0.000000e+00> : vector<16xf32>
    %11 = vector.multi_reduction <add>, %10, %cst_4 [1] : vector<16x128xf32> to vector<16xf32>
    %12 = vector.shape_cast %11 : vector<16xf32> to vector<16x1xf32>
    %cst_5 = arith.constant 1.000000e-24 : f32
    %13 = vector.broadcast %cst_5 : f32 to vector<16x1xf32>
    %14 = arith.maximumf %12, %13 : vector<16x1xf32>
    %15 = math.rsqrt %14 : vector<16x1xf32>
    %16 = vector.broadcast %15 : vector<16x1xf32> to vector<16x128xf32>
    %17 = arith.mulf %1, %16 : vector<16x128xf32>
    %18 = arith.mulf %9, %17 : vector<16x128xf32>
    %cst_6 = arith.constant dense<0.000000e+00> : vector<16xf32>
    %19 = vector.multi_reduction <add>, %18, %cst_6 [1] : vector<16x128xf32> to vector<16xf32>
    %20 = vector.shape_cast %19 : vector<16xf32> to vector<16x1xf32>
    %cst_7 = arith.constant 1.000000e+01 : f32
    %21 = vector.broadcast %cst_7 : f32 to vector<16x1xf32>
    %22 = arith.mulf %20, %21 : vector<16x1xf32>
    %c0_8 = arith.constant 0 : index
    %c0_9 = arith.constant 0 : index
    %23 = vector.load %arg5[%c0_8, %c0_9] : memref<16x1xf32, #tpu.memory_space<vmem>>, vector<16x1xf32>
    tpu.vector_store %arg5[%c0_8, %c0_9], %22 {strides = array<i32>} : memref<16x1xf32, #tpu.memory_space<vmem>>, vector<16x1xf32>,
    %cst_10 = arith.constant 3.1622777 : f32
    %24 = vector.broadcast %cst_10 : f32 to vector<16x128xf32>
    %25 = arith.mulf %9, %24 : vector<16x128xf32>
    %26 = arith.truncf %25 : vector<16x128xf32> to vector<16x128xbf16>
    %c0_11 = arith.constant 0 : index
    %c0_12 = arith.constant 0 : index
    %27 = vector.load %arg3[%c0_11, %c0_12] : memref<16x128xbf16, #tpu.memory_space<vmem>>, vector<16x128xbf16>
    tpu.vector_store %arg3[%c0_11, %c0_12], %26 {strides = array<i32>} : memref<16x128xbf16, #tpu.memory_space<vmem>>, vector<16x128xbf16>,
    %cst_13 = arith.constant 3.1622777 : f32
    %28 = vector.broadcast %cst_13 : f32 to vector<16x128xf32>
    %29 = arith.mulf %17, %28 : vector<16x128xf32>
    %30 = arith.truncf %29 : vector<16x128xf32> to vector<16x128xbf16>
    %c0_14 = arith.constant 0 : index
    %c0_15 = arith.constant 0 : index
    %31 = vector.load %arg4[%c0_14, %c0_15] : memref<16x128xbf16, #tpu.memory_space<vmem>>, vector<16x128xbf16>
    tpu.vector_store %arg4[%c0_14, %c0_15], %30 {strides = array<i32>} : memref<16x128xbf16, #tpu.memory_space<vmem>>, vector<16x128xbf16>,
    return
  }
  func.func @transform_0(%arg0: i32) -> (i32, i32) {
    %c0_i32 = arith.constant 0 : i32
    %c0_i32_0 = arith.constant 0 : i32
    return %arg0, %c0_i32 : i32, i32
  }
  func.func @transform_1(%arg0: i32) -> (i32, i32) {
    %c0_i32 = arith.constant 0 : i32
    %c0_i32_0 = arith.constant 0 : i32
    return %arg0, %c0_i32 : i32, i32
  }
  func.func @transform_2(%arg0: i32) -> (i32, i32) {
    %c0_i32 = arith.constant 0 : i32
    %c0_i32_0 = arith.constant 0 : i32
    return %arg0, %c0_i32 : i32, i32
  }
  func.func @transform_3(%arg0: i32) -> (i32, i32) {
    %c0_i32 = arith.constant 0 : i32
    %c0_i32_0 = arith.constant 0 : i32
    return %arg0, %c0_i32 : i32, i32
  }
  func.func @transform_4(%arg0: i32) -> (i32, i32) {
    %c0_i32 = arith.constant 0 : i32
    %c0_i32_0 = arith.constant 0 : i32
    return %arg0, %c0_i32 : i32, i32
  }
}

</mosaic_0001>

<llo_original>
// kernel: tpu_custom_call.1
$region0: #{tpu_custom_call.1}
  #allocation0 [shape = 'u32[]', space=smem, size = 0x4, offset = 0x4, fixed_abs, tag = 'smem constant byte address 0x4 - core index']
  #allocation1 [shape = 'u32[144,128]{1,0:T(1,128)}', space=vmem, size = 0x12000, scoped, tag = 'internal scratch']
  %s0 = inlined_call_operand.hbm [shape: f32[16,128], index: 0, kind: input, shape index: {}]
  %s1 = inlined_call_operand.hbm [shape: f32[16,128], index: 1, kind: input, shape index: {}]
  %s2 = inlined_call_operand.hbm [shape: bf16[16,128], index: 2, kind: output, shape index: {0}]
  %s3 = inlined_call_operand.hbm [shape: bf16[16,128], index: 3, kind: output, shape index: {1}]
  %s4 = inlined_call_operand.vmem [shape: f32[16,1], index: 4, kind: output, shape index: {2}]
  %5 = xla_tuple %s2, %s3, %s4
  %s6 = sld [smem:[#allocation0]]
  $region42: #{tpu_custom_call.1} parent=0
    _
  %s8 = ssub.s32 1, %s6
  %s9 = scalar_select 0, %s8, %s6
  $region1: #{tpu_custom_call.1} parent=0
    #allocation2 [shape = 'u8[8192]{0}', space=vmem, size = 0x2000, scoped, tag = 'input window, operand 0, single buffered']
    #allocation3 [shape = 's32[1]{0}', space=sflag, size = 0x4, scoped, tag = 'scoped memory for tpu_custom_call.1']
    #allocation4 [shape = 's32[1]{0}', space=sflag, size = 0x4, scoped, tag = 'scoped memory for tpu_custom_call.1']
    #allocation5 [shape = 'u8[8192]{0}', space=vmem, size = 0x2000, scoped, tag = 'input window, operand 1, single buffered']
    #allocation6 [shape = 's32[1]{0}', space=sflag, size = 0x4, scoped, tag = 'scoped memory for tpu_custom_call.1']
    #allocation7 [shape = 'u8[4096]{0}', space=vmem, size = 0x1000, scoped, tag = 'output window, operand 0, single buffered']
    #allocation8 [shape = 'u8[4096]{0}', space=vmem, size = 0x1000, scoped, tag = 'output window, operand 1, single buffered']
    #allocation9 [shape = 's32[1]{0}', space=sflag, size = 0x4, scoped, tag = 'scoped memory for tpu_custom_call.1']
    %10 = vsyncpa [#allocation3], 0
    %11 = vsyncpa [#allocation6], 0
    %12 = vsyncpa [#allocation4], 0
    %13 = vsyncpa [#allocation9], 0
    // Predicated region
    $region2: #{tpu_custom_call.1} parent=1 // pred_check
      _
    $region3: #{tpu_custom_call.1} parent=1 // pred_check_branch
      %15 = sbr.rel (0) target = $region5
    $region4: #{tpu_custom_call.1} parent=1 // pred_region
      %s17 = ssub.s32 256, 256
      %18 = vsyncadd [#allocation3], %s17
      %s19 = sshll.u32 [#allocation2], 4
      %s20 = int_to_ptr.vmem [resolvable:$true] %s19
      %25 = dma.hbm_to_vmem [thread:$0]  %s0, 256, %s20, [#allocation3], 128, 128, 8
    $region5: #{tpu_custom_call.1} parent=1 // pred_fallthru
      _
    // Predicated region
    $region6: #{tpu_custom_call.1} parent=1 // pred_check
      _
    $region7: #{tpu_custom_call.1} parent=1 // pred_check_branch
      %27 = sbr.rel (0) target = $region9
    $region8: #{tpu_custom_call.1} parent=1 // pred_region
      %s29 = ssub.s32 256, 256
      %30 = vsyncadd [#allocation6], %s29
      %s31 = sshll.u32 [#allocation5], 4
      %s32 = int_to_ptr.vmem [resolvable:$true] %s31
      %37 = dma.hbm_to_vmem [thread:$0]  %s1, 256, %s32, [#allocation6], 128, 128, 8
    $region9: #{tpu_custom_call.1} parent=1 // pred_fallthru
      _
    // Predicated region
    $region10: #{tpu_custom_call.1} parent=1 // pred_check
      _
    $region11: #{tpu_custom_call.1} parent=1 // pred_check_branch
      %39 = sbr.rel (0) target = $region13
    $region12: #{tpu_custom_call.1} parent=1 // pred_region
      %40 = dma.done [#allocation3], 256
    $region13: #{tpu_custom_call.1} parent=1 // pred_fallthru
      _
    // Predicated region
    $region14: #{tpu_custom_call.1} parent=1 // pred_check
      _
    $region15: #{tpu_custom_call.1} parent=1 // pred_check_branch
      %42 = sbr.rel (0) target = $region17
    $region16: #{tpu_custom_call.1} parent=1 // pred_region
      %43 = dma.done [#allocation6], 256
    $region17: #{tpu_custom_call.1} parent=1 // pred_fallthru
      _
    %v44 = vld [vmem:[#allocation2] sm:$0xff]
    %v45 = vld [vmem:[#allocation2 + $0x8] sm:$0xff]
    %v46 = vld [vmem:[#allocation5] sm:$0xff]
    %v47 = vld [vmem:[#allocation5 + $0x8] sm:$0xff]
    %v48 = vmul.f32 %v44, %v44
    %v49 = vmul.f32 %v45, %v45
    %50 = vadd.xlane.f32.xlu0 %v48
    %v51 = vpop.xlane.xlu0 %50
    %52 = vadd.xlane.f32.xlu0 %v49
    %v53 = vpop.xlane.xlu0 %52
    %v54 = vmax.f32 %v51, 1e-24
    %v55 = vmax.f32 %v53, 1e-24
    %v56 = vrsqrt.pop %v54
    %v57 = vrsqrt.pop %v55
    %v58 = vmul.f32 %v44, %v56
    %v59 = vmul.f32 %v45, %v57
    %v60 = vmul.f32 %v46, %v46
    %v61 = vmul.f32 %v47, %v47
    %62 = vadd.xlane.f32.xlu0 %v60
    %v63 = vpop.xlane.xlu0 %62
    %64 = vadd.xlane.f32.xlu0 %v61
    %v65 = vpop.xlane.xlu0 %64
    %v66 = vmax.f32 %v63, 1e-24
    %v67 = vmax.f32 %v65, 1e-24
    %v68 = vrsqrt.pop %v66
    %v69 = vrsqrt.pop %v67
    %v70 = vmul.f32 %v46, %v68
    %v71 = vmul.f32 %v47, %v69
    %v72 = vmul.f32 %v58, %v70
    %v73 = vmul.f32 %v59, %v71
    %74 = vadd.xlane.f32.xlu0 %v72
    %v75 = vpop.xlane.xlu0 %74
    %76 = vadd.xlane.f32.xlu0 %v73
    %v77 = vpop.xlane.xlu0 %76
    %v78 = vmul.f32 %v75, 10.0
    %v79 = vmul.f32 %v77, 10.0
    %vm80 = vcmask 7168
    %81 = vst.msk [vmem:[%s4] sm:$0xff] %vm80, %v78
    %82 = vst.msk [vmem:[%s4 + $0x8] sm:$0xff] %vm80, %v79
    %v83 = vmul.f32 %v58, 3.1622777
    %v84 = vmul.f32 %v59, 3.1622777
    %v85 = vpack.c.bf16 %v84, %v83
    %v87 = vunpack.c.l.b16 %v85
    %v88 = vunpack.c.h.b16 %v85
    %v89 = vpack.c.b16 %v87, %v87
    %v90 = vpack.c.b16 %v88, %v88
    %93 = vst [vmem:[#allocation7] sm:$0xf] %v89
    %94 = vst [vmem:[#allocation7 + $0x4] sm:$0xf] %v90
    %v95 = vmul.f32 %v70, 3.1622777
    %v96 = vmul.f32 %v71, 3.1622777
    %v97 = vpack.c.bf16 %v96, %v95
    %v99 = vunpack.c.l.b16 %v97
    %v100 = vunpack.c.h.b16 %v97
    %v101 = vpack.c.b16 %v99, %v99
    %v102 = vpack.c.b16 %v100, %v100
    %105 = vst [vmem:[#allocation8] sm:$0xf] %v101
    %106 = vst [vmem:[#allocation8 + $0x4] sm:$0xf] %v102
    // Predicated region
    $region18: #{tpu_custom_call.1} parent=1 // pred_check
      _
    $region19: #{tpu_custom_call.1} parent=1 // pred_check_branch
      %108 = sbr.rel (0) target = $region21
    $region20: #{tpu_custom_call.1} parent=1 // pred_region
      %s110 = ssub.s32 128, 128
      %111 = vsyncadd [#allocation4], %s110
      %s112 = sshll.u32 [#allocation7], 4
      %s113 = int_to_ptr.vmem [resolvable:$true] %s112
      %118 = dma.vmem_to_hbm [thread:$0]  %s113, 128, %s2, [#allocation4], 64, 64, 4
    $region21: #{tpu_custom_call.1} parent=1 // pred_fallthru
      _
    // Predicated region
    $region22: #{tpu_custom_call.1} parent=1 // pred_check
      _
    $region23: #{tpu_custom_call.1} parent=1 // pred_check_branch
      %120 = sbr.rel (0) target = $region25
    $region24: #{tpu_custom_call.1} parent=1 // pred_region
      %s122 = ssub.s32 128, 128
      %123 = vsyncadd [#allocation9], %s122
      %s124 = sshll.u32 [#allocation8], 4
      %s125 = int_to_ptr.vmem [resolvable:$true] %s124
      %130 = dma.vmem_to_hbm [thread:$0]  %s125, 128, %s3, [#allocation9], 64, 64, 4
    $region25: #{tpu_custom_call.1} parent=1 // pred_fallthru
      _
    // Predicated region
    $region26: #{tpu_custom_call.1} parent=1 // pred_check
      _
    $region27: #{tpu_custom_call.1} parent=1 // pred_check_branch
      %132 = sbr.rel (0) target = $region29
    $region28: #{tpu_custom_call.1} parent=1 // pred_region
      _
    $region29: #{tpu_custom_call.1} parent=1 // pred_fallthru
      _
    // Predicated region
    $region30: #{tpu_custom_call.1} parent=1 // pred_check
      _
    $region31: #{tpu_custom_call.1} parent=1 // pred_check_branch
      %134 = sbr.rel (0) target = $region33
    $region32: #{tpu_custom_call.1} parent=1 // pred_region
      %135 = dma.done [#allocation4], 128
    $region33: #{tpu_custom_call.1} parent=1 // pred_fallthru
      _
    // Predicated region
    $region34: #{tpu_custom_call.1} parent=1 // pred_check
      _
    $region35: #{tpu_custom_call.1} parent=1 // pred_check_branch
      %137 = sbr.rel (0) target = $region37
    $region36: #{tpu_custom_call.1} parent=1 // pred_region
      %138 = dma.done [#allocation9], 128
    $region37: #{tpu_custom_call.1} parent=1 // pred_fallthru
      _
    // Predicated region
    $region38: #{tpu_custom_call.1} parent=1 // pred_check
      _
    $region39: #{tpu_custom_call.1} parent=1 // pred_check_branch
      %140 = sbr.rel (0) target = $region41
    $region40: #{tpu_custom_call.1} parent=1 // pred_region
      _
    $region41: #{tpu_custom_call.1} parent=1 // pred_fallthru
      _
    %141 = vsyncpa [#allocation3], 1
    %142 = vsyncpa [#allocation6], 1
    %143 = vsyncpa [#allocation4], 1
    %144 = vsyncpa [#allocation9], 1

</llo_original>
